<compile_context>
chip_gen: v5e
topology: v5e:2x2
jax: 0.10.0
libtpu: 0.0.40
codegen_flags: <defaults>
</compile_context>

<pallas_src>
import functools

import jax
import jax.numpy as jnp
from jax import lax
from jax.experimental import pallas as pl
from jax.experimental.pallas import tpu as pltpu


_ROW_ALIGN = 16  # bf16 sublane tile: keeps the in-kernel anchor-row slice aligned.
_SINGLE_BUFFER_RESIDENT = [True]  # falls back to default buffering if Buffered(1) is rejected.


def _round_up(x, m):
    return ((x + m - 1) // m) * m


def _vmem_capacity_bytes():
    """Physical VMEM per TensorCore (v5e/v6e: 128 MiB, v7x: 64 MiB); safe fallback."""
    try:
        info = pltpu.get_tpu_info()
        for name in ("vmem_capacity_bytes", "vmem_size_bytes", "vmem_bytes"):
            v = getattr(info, name, None)
            if v:
                return int(v)
    except Exception:
        pass
    return 64 * 2 ** 20


def _iota_masks(tm, ncp, n_anchor, n_contrast, pad_rows, pad_cols):
    """Self-exclusion mask (+ pad-column exclusion, row validity) from iota."""
    i = pl.program_id(0)
    row_ids = lax.broadcasted_iota(jnp.int32, (tm, 1), 0) + i * tm     # global anchor row
    col_ids = lax.broadcasted_iota(jnp.int32, (1, ncp), 1)             # contrast column
    lmask = col_ids != row_ids                                         # (tm, ncp) bool
    if pad_cols:  # only pay for the pad-column compare when padding actually exists
        lmask = jnp.logical_and(lmask, col_ids < n_contrast)
    row_valid = (row_ids < n_anchor) if pad_rows else None
    return lmask, row_valid


def _tile_body(contrast_ref, out_ref, lmask, row_valid, pos_sum_fn, inv_cnt, *,
               tm, loss_scale):
    """Shared SupCon math for one (tm x ncp) tile of anchor rows.

    1/temperature is pre-folded into the features (1/sqrt(T) on each operand),
    and 1/num_positives is precomputed in XLA, so the in-kernel work is one MXU
    matmul plus a handful of f32 selects / reductions.
    """
    i = pl.program_id(0)
    # Anchor rows are the leading rows of the resident contrast matrix in both
    # 'all' and 'one' modes -> slice them instead of a second input / DMA.
    start = pl.multiple_of(i * tm, tm)
    a = contrast_ref[pl.ds(start, tm), :]                               # (tm, D) bf16

    # MXU matmul, bf16 operands, f32 accumulation; contraction on the last
    # (lane) dim of both operands so no transpose / XLU relayout is needed.
    logits = lax.dot_general(a, contrast_ref[...],
                             dimension_numbers=(((1,), (1,)), ((), ())),
                             preferred_element_type=jnp.float32)        # (tm, ncp) f32
    # Numerical-stability shift (cancels exactly in log_prob; zero-padded
    # contrast columns can only raise the shift, never lower it).
    logits = logits - jnp.max(logits, axis=1, keepdims=True)

    # Softmax denominator over non-self (and non-padded) columns; boolean
    # select instead of an f32 mask multiply.
    exp_logits = jnp.where(lmask, jnp.exp(logits), 0.0)
    log_denom = jnp.log(jnp.sum(exp_logits, axis=1, keepdims=True))     # (tm, 1)

    # mean_k log_prob over positives == (sum_k w*logits) * (1/sum_k w) - log_denom,
    # with 1/sum_k w streamed in (precomputed from labels / mask in XLA).
    pos_logit_sum = pos_sum_fn(logits)                                  # (tm, 1)
    loss_rows = loss_scale * (pos_logit_sum * inv_cnt - log_denom)      # (tm, 1)

    if row_valid is not None:
        # Padded anchor rows are zeroed; real rows with no positives stay NaN
        # (matching torch's 0/0 behaviour).
        loss_rows = jnp.where(row_valid, loss_rows, 0.0)
    out_ref[...] = loss_rows


def _supcon_label_kernel(row_lbl_ref, inv_cnt_ref, col_lbl_ref, contrast_ref, out_ref, *,
                         tm, n_anchor, n_contrast, pad_rows, pad_cols, loss_scale):
    ncp = contrast_ref.shape[0]
    lmask, row_valid = _iota_masks(tm, ncp, n_anchor, n_contrast, pad_rows, pad_cols)
    pos_bool = jnp.logical_and(row_lbl_ref[...] == col_lbl_ref[...], lmask)

    def pos_sum(logits):  # binary positives -> boolean select, no f32 multiply
        return jnp.sum(jnp.where(pos_bool, logits, 0.0), axis=1, keepdims=True)

    _tile_body(contrast_ref, out_ref, lmask, row_valid, pos_sum, inv_cnt_ref[...],
               tm=tm, loss_scale=loss_scale)


def _supcon_mask_kernel(mask_ref, inv_cnt_ref, contrast_ref, out_ref, *,
                        tm, n_anchor, n_contrast, pad_rows, pad_cols, loss_scale):
    ncp = contrast_ref.shape[0]
    lmask, row_valid = _iota_masks(tm, ncp, n_anchor, n_contrast, pad_rows, pad_cols)
    # User mask may be non-binary -> weighted sum (mask streamed as bf16, math in f32).
    pos_w = jnp.where(lmask, mask_ref[...].astype(jnp.float32), 0.0)

    def pos_sum(logits):
        return jnp.sum(pos_w * logits, axis=1, keepdims=True)

    _tile_body(contrast_ref, out_ref, lmask, row_valid, pos_sum, inv_cnt_ref[...],
               tm=tm, loss_scale=loss_scale)


def supcon_loss(features, labels=None, mask=None, temperature=0.07,
                contrast_mode='all', base_temperature=0.07, block_rows=256):
    """JAX/Pallas re-implementation of SupConLoss.forward ('all' or 'one').

    Note: the pairwise-similarity matmul uses bf16 MXU operands with f32
    accumulation; verify tolerance for very small temperatures / large dims.
    """
    features = jnp.asarray(features)
    if features.ndim < 3:
        raise ValueError('`features` needs to be [bsz, n_views, ...]')
    if features.ndim > 3:
        features = features.reshape(features.shape[0], features.shape[1], -1)
    bsz, n_views, dim = features.shape
    if labels is not None and mask is not None:
        raise ValueError('Cannot define both `labels` and `mask`')

    contrast_count = n_views
    # torch.cat(torch.unbind(features, dim=1), dim=0): view index varies slowest.
    contrast_feature = jnp.transpose(features, (1, 0, 2)).reshape(bsz * n_views, dim)
    if contrast_mode == 'one':
        anchor_count = 1
    elif contrast_mode == 'all':
        anchor_count = contrast_count
    else:
        raise ValueError('Unknown mode: {}'.format(contrast_mode))
    n_anchor = bsz * anchor_count
    n_contrast = bsz * contrast_count

    # ---- tile-size / VMEM budgeting --------------------------------------
    vmem_budget = int(_vmem_capacity_bytes() * 0.78)  # headroom for Mosaic internal scratch

    def vmem_estimate(tm):
        n_a_pad = _round_up(n_anchor, tm)
        n_c_pad = max(_round_up(n_contrast, _ROW_ALIGN), n_a_pad)
        resident = n_c_pad * dim * 2 + n_c_pad * 4         # bf16 features + int32 labels (1 buffer)
        per_tile = 6 * tm * n_c_pad * 4                    # live f32 (tm, N) intermediates
        streamed = (2 * tm * n_c_pad * 2) if mask is not None else 0  # bf16 mask double buffer
        small = 8 * tm * 4                                 # row labels / inv counts / outputs
        return resident + per_tile + streamed + small + (2 << 20)

    n16 = _round_up(n_anchor, _ROW_ALIGN)
    tm = _round_up(pl.cdiv(n16, max(1, pl.cdiv(n16, max(block_rows, _ROW_ALIGN)))), _ROW_ALIGN)
    # v7x has 2 TensorCores: keep >= 2 row tiles for mid/large batches so the
    # "parallel" grid axis gives both cores work (no-op on 1-TC v5e/v6e).
    if n_anchor > 4 * _ROW_ALIGN and n16 <= tm:
        tm = _round_up(pl.cdiv(n16, 2), _ROW_ALIGN)
    # Shrink the row tile until the resident + per-tile estimate fits VMEM.
    while tm > _ROW_ALIGN and vmem_estimate(tm) > vmem_budget:
        tm = _round_up(tm // 2, _ROW_ALIGN)
    # TODO(synk): for batch*dim too large for the fully-resident design (mostly
    # v7x's 64 MiB/TC), add a column-tiled online-softmax fallback instead of
    # shrinking tm all the way down.

    n_anchor_pad = _round_up(n_anchor, tm)
    n_contrast_pad = max(_round_up(n_contrast, _ROW_ALIGN), n_anchor_pad)
    num_tiles = n_anchor_pad // tm
    pad_rows = n_anchor_pad != n_anchor
    pad_cols = n_contrast_pad != n_contrast
    vmem_limit = int(min(vmem_budget, max(16 * 2 ** 20, 2 * vmem_estimate(tm))))

    # ---- operand preparation (XLA) ----------------------------------------
    # Fold 1/temperature into the features as 1/sqrt(T): the anchor tile is a
    # slice of the same resident matrix, so the product comes out scaled by
    # 1/T and the per-element post-matmul multiply disappears.
    inv_sqrt_t = float(temperature) ** -0.5
    cf = (contrast_feature.astype(jnp.float32) * inv_sqrt_t).astype(jnp.bfloat16)
    cf = jnp.pad(cf, ((0, n_contrast_pad - n_contrast), (0, 0)))
    loss_scale = float(-(temperature / base_temperature))

    compiler_params = pltpu.CompilerParams(
        dimension_semantics=("parallel",),
        vmem_limit_bytes=vmem_limit)
    out_shape = jax.ShapeDtypeStruct((n_anchor_pad, 1), jnp.float32)
    out_spec = pl.BlockSpec((tm, 1), lambda i: (i, 0))
    row_spec = pl.BlockSpec((tm, 1), lambda i: (i, 0))

    static = dict(tm=tm, n_anchor=n_anchor, n_contrast=n_contrast,
                  pad_rows=pad_rows, pad_cols=pad_cols, loss_scale=loss_scale)

    # 1/num_positives per anchor row, precomputed in XLA (depends only on
    # labels / mask).  0 positives -> inf -> 0*inf = NaN in-kernel, matching
    # torch's 0/0; padded rows get 0 and are zeroed in-kernel anyway.
    if mask is None:
        if labels is None:
            lbl = jnp.arange(bsz, dtype=jnp.int32)               # SimCLR: mask == eye
        else:
            lbl = jnp.asarray(labels).reshape(-1).astype(jnp.int32)
            if lbl.shape[0] != bsz:
                raise ValueError('Num of labels does not match num of features')
        same_cnt = jnp.sum(lbl[:, None] == lbl[None, :], axis=1).astype(jnp.float32)
        pos_cnt = same_cnt * contrast_count - 1.0                # same-label contrast cols minus self
        inv_cnt = jnp.tile(1.0 / pos_cnt, anchor_count)[:n_anchor]
        inv_cnt = jnp.pad(inv_cnt, (0, n_anchor_pad - n_anchor)).reshape(n_anchor_pad, 1)

        col_lbl = jnp.pad(jnp.tile(lbl, contrast_count),
                          (0, n_contrast_pad - n_contrast),
                          constant_values=-1)                    # padded cols are masked anyway
        row_lbl = col_lbl[:n_anchor_pad].reshape(n_anchor_pad, 1)
        col_lbl = col_lbl.reshape(1, n_contrast_pad)
    else:
        mask_small = jnp.asarray(mask, dtype=jnp.float32)
        pos_cnt = (contrast_count * jnp.sum(mask_small, axis=1)
                   - jnp.diagonal(mask_small))                   # sum over non-self contrast cols
        inv_cnt = jnp.tile(1.0 / pos_cnt, anchor_count)[:n_anchor]
        inv_cnt = jnp.pad(inv_cnt, (0, n_anchor_pad - n_anchor)).reshape(n_anchor_pad, 1)

        # Streamed (tm, N) tiles of the tiled mask, cast to bf16 (halves HBM
        # traffic; exact for the usual 0/1 masks).
        mask_big = jnp.tile(mask_small, (anchor_count, contrast_count))
        mask_big = jnp.pad(mask_big, ((0, n_anchor_pad - n_anchor),
                                      (0, n_contrast_pad - n_contrast)))
        mask_big = mask_big.astype(jnp.bfloat16)

    def _launch(single_buffer_resident):
        # Resident operands: constant index_map -> double buffering only doubles
        # footprint, so request a single buffer (big VMEM win on v7x).
        res_kw = ({'pipeline_mode': pl.Buffered(1)} if single_buffer_resident else {})
        contrast_spec = pl.BlockSpec((n_contrast_pad, dim), lambda i: (0, 0), **res_kw)
        if mask is None:
            col_spec = pl.BlockSpec((1, n_contrast_pad), lambda i: (0, 0), **res_kw)
            return pl.pallas_call(
                functools.partial(_supcon_label_kernel, **static),
                grid=(num_tiles,),
                in_specs=[row_spec, row_spec, col_spec, contrast_spec],
                out_specs=out_spec, out_shape=out_shape,
                compiler_params=compiler_params,
            )(row_lbl, inv_cnt, col_lbl, cf)
        return pl.pallas_call(
            functools.partial(_supcon_mask_kernel, **static),
            grid=(num_tiles,),
            in_specs=[pl.BlockSpec((tm, n_contrast_pad), lambda i: (i, 0)),
                      row_spec, contrast_spec],
            out_specs=out_spec, out_shape=out_shape,
            compiler_params=compiler_params,
        )(mask_big, inv_cnt, cf)

    if _SINGLE_BUFFER_RESIDENT[0]:
        try:
            losses = _launch(True)
        except Exception:  # pl.Buffered(1) rejected by this jax build -> default buffering
            _SINGLE_BUFFER_RESIDENT[0] = False
            losses = _launch(False)
    else:
        losses = _launch(False)

    # Final mean over the real anchor rows (padded rows are exactly 0; tiny, done in XLA).
    return jnp.sum(losses) / n_anchor


def _reference_supcon(features, labels=None, mask=None, temperature=0.07,
                      contrast_mode='all', base_temperature=0.07,
                      matmul_dtype=jnp.float32, fold_sqrt_temp=False):
    """Pure-JAX transcription of the PyTorch SupConLoss.forward for checking.

    `matmul_dtype=jnp.bfloat16` + `fold_sqrt_temp=True` mirrors the kernel's
    bf16 MXU operands with 1/sqrt(T) folded into each operand (f32 accumulate)."""
    features = jnp.asarray(features, jnp.float32)
    bsz, n_views, dim = features.shape
    if labels is None and mask is None:
        mask = jnp.eye(bsz, dtype=jnp.float32)
    elif labels is not None:
        labels = jnp.asarray(labels).reshape(-1, 1)
        mask = (labels == labels.T).astype(jnp.float32)
    else:
        mask = jnp.asarray(mask, dtype=jnp.float32)
    contrast_count = n_views
    cf = jnp.transpose(features, (1, 0, 2)).reshape(bsz * n_views, dim)
    anchor_count = 1 if contrast_mode == 'one' else contrast_count
    if fold_sqrt_temp:
        cf_mm = (cf * (float(temperature) ** -0.5)).astype(matmul_dtype)
        post_scale = 1.0
    else:
        cf_mm = cf.astype(matmul_dtype)
        post_scale = 1.0 / temperature
    af_mm = cf_mm[:bsz] if contrast_mode == 'one' else cf_mm
    adc = lax.dot_general(af_mm, cf_mm,
                          dimension_numbers=(((1,), (1,)), ((), ())),
                          preferred_element_type=jnp.float32) * post_scale
    logits = adc - jnp.max(adc, axis=1, keepdims=True)
    n_anchor = bsz * anchor_count
    n_contrast = bsz * contrast_count
    mask = jnp.tile(mask, (anchor_count, contrast_count))
    logits_mask = (jnp.arange(n_contrast)[None, :]
                   != jnp.arange(n_anchor)[:, None]).astype(jnp.float32)
    mask = mask * logits_mask
    exp_logits = jnp.exp(logits) * logits_mask
    log_prob = logits - jnp.log(exp_logits.sum(1, keepdims=True))
    mean_log_prob_pos = (mask * log_prob).sum(1) / mask.sum(1)
    loss = -(temperature / base_temperature) * mean_log_prob_pos
    return jnp.mean(loss)


if __name__ == "__main__":
    key = jax.random.PRNGKey(0)

    def check(got, ref_tight, ref_f32, name):
        got = jax.block_until_ready(got)
        # Tight check vs. a reference using the same bf16 / folded-scale matmul.
        assert jnp.allclose(got, ref_tight, rtol=5e-3, atol=5e-3), (name, got, ref_tight)
        # Loose sanity check vs. the full-f32 torch-faithful formula.
        assert jnp.allclose(got, ref_f32, rtol=5e-2, atol=5e-2), (name, got, ref_f32)

    def run_case(name, features, **kw):
        check(supcon_loss(features, **kw),
              _reference_supcon(features, matmul_dtype=jnp.bfloat16,
                                fold_sqrt_temp=True, **kw),
              _reference_supcon(features, **kw),
              name)

    # Case A: bsz=4, n_views=2, feat_dim=32 (L2-normalized, standard SupCon usage).
    k1, k2 = jax.random.split(key)
    feats_a = jax.random.normal(k1, (4, 2, 32), dtype=jnp.float32)
    feats_a = feats_a / jnp.linalg.norm(feats_a, axis=-1, keepdims=True)
    labels_a = jnp.array([0, 1, 0, 1], dtype=jnp.int32)

    run_case("supervised/all", feats_a, labels=labels_a)                      # label path
    run_case("simclr/all", feats_a)                                           # labels=None (eye mask)
    run_case("supervised/one", feats_a, labels=labels_a, contrast_mode='one') # n_anchor < n_contrast
    mask_a = (labels_a[:, None] == labels_a[None, :]).astype(jnp.float32)
    run_case("explicit-mask/all", feats_a, mask=mask_a)                       # streamed-mask path

    # Case B: odd sizes -> exercises real row- and column-padding in-kernel.
    feats_b = jax.random.normal(k2, (5, 3, 40), dtype=jnp.float32)
    feats_b = feats_b / jnp.linalg.norm(feats_b, axis=-1, keepdims=True)
    labels_b = jnp.array([0, 1, 0, 2, 1], dtype=jnp.int32)
    run_case("supervised/all/pad", feats_b, labels=labels_b)
    run_case("supervised/one/pad", feats_b, labels=labels_b, contrast_mode='one')
    run_case("simclr/all/pad", feats_b)

    print("KERNEL_OK")
</pallas_src>

<mosaic_0001>
module attributes {stable_mosaic.version = 11 : i64} {
  func.func @_supcon_label_kernel(%arg0: i32, %arg1: memref<16x1xi32, #tpu.memory_space<vmem>>, %arg2: memref<16x1xf32, #tpu.memory_space<vmem>>, %arg3: memref<1x16xi32, #tpu.memory_space<vmem>>, %arg4: memref<16x32xbf16, #tpu.memory_space<vmem>>, %arg5: memref<16x1xf32, #tpu.memory_space<vmem>>) attributes {dimension_semantics = [#tpu.dimension_semantics<parallel>], iteration_bounds = array<i64: 1>, scalar_prefetch = 0 : i64, scratch_operands = 0 : i64, tpu.core_type = #tpu.core_type<tc>, window_params = [{transform_indices = @transform_0, window_bounds = array<i64: 16, 1>}, {transform_indices = @transform_1, window_bounds = array<i64: 16, 1>}, {pipeline_mode = #tpu.pipeline_mode<synchronous>, transform_indices = @transform_2, window_bounds = array<i64: 1, 16>}, {pipeline_mode = #tpu.pipeline_mode<synchronous>, transform_indices = @transform_3, window_bounds = array<i64: 16, 32>}, {transform_indices = @transform_4, window_bounds = array<i64: 16, 1>}]} {
    %0 = tpu.iota {dimensions = array<i32: 0>} : vector<16x1xi32>
    %c16_i32 = arith.constant 16 : i32
    %1 = arith.muli %arg0, %c16_i32 : i32
    %2 = vector.broadcast %1 : i32 to vector<16x1xi32>
    %3 = arith.addi %0, %2 : vector<16x1xi32>
    %4 = tpu.iota {dimensions = array<i32: 1>} : vector<1x16xi32>
    %5 = vector.broadcast %4 : vector<1x16xi32> to vector<16x16xi32>
    %6 = vector.broadcast %3 : vector<16x1xi32> to vector<16x16xi32>
    %7 = arith.cmpi ne, %5, %6 : vector<16x16xi32>
    %c8_i32 = arith.constant 8 : i32
    %8 = vector.broadcast %c8_i32 : i32 to vector<1x16xi32>
    %9 = arith.cmpi slt, %4, %8 : vector<1x16xi32>
    %10 = vector.broadcast %9 : vector<1x16xi1> to vector<16x16xi1>
    %11 = arith.andi %7, %10 : vector<16x16xi1>
    %c8_i32_0 = arith.constant 8 : i32
    %12 = vector.broadcast %c8_i32_0 : i32 to vector<16x1xi32>
    %13 = arith.cmpi slt, %3, %12 : vector<16x1xi32>
    %c0 = arith.constant 0 : index
    %c0_1 = arith.constant 0 : index
    %14 = vector.load %arg1[%c0, %c0_1] : memref<16x1xi32, #tpu.memory_space<vmem>>, vector<16x1xi32>
    %c0_2 = arith.constant 0 : index
    %c0_3 = arith.constant 0 : index
    %15 = vector.load %arg3[%c0_2, %c0_3] : memref<1x16xi32, #tpu.memory_space<vmem>>, vector<1x16xi32>
    %16 = vector.broadcast %14 : vector<16x1xi32> to vector<16x16xi32>
    %17 = vector.broadcast %15 : vector<1x16xi32> to vector<16x16xi32>
    %18 = arith.cmpi eq, %16, %17 : vector<16x16xi32>
    %19 = arith.andi %18, %11 : vector<16x16xi1>
    %c0_4 = arith.constant 0 : index
    %c0_5 = arith.constant 0 : index
    %20 = vector.load %arg2[%c0_4, %c0_5] : memref<16x1xf32, #tpu.memory_space<vmem>>, vector<16x1xf32>
    %c16_i32_6 = arith.constant 16 : i32
    %21 = arith.muli %arg0, %c16_i32_6 : i32
    %22 = tpu.assume_multiple %21, 16 : i32
    %23 = arith.index_cast %22 : i32 to index
    %c0_7 = arith.constant 0 : index
    %24 = vector.load %arg4[%23, %c0_7] : memref<16x32xbf16, #tpu.memory_space<vmem>>, vector<16x32xbf16>
    %c0_8 = arith.constant 0 : index
    %c0_9 = arith.constant 0 : index
    %25 = vector.load %arg4[%c0_8, %c0_9] : memref<16x32xbf16, #tpu.memory_space<vmem>>, vector<16x32xbf16>
    %cst = arith.constant dense<0.000000e+00> : vector<16x16xf32>
    %26 = tpu.matmul %24, %25, %cst {dimension_numbers = #tpu.dot_dimension_numbers<[1], [1], [0], [0], [0, 0, 1, 0], [], []>} : vector<16x32xbf16>, vector<16x32xbf16>, vector<16x16xf32> -> vector<16x16xf32>
    %cst_10 = arith.constant dense<0xFF800000> : vector<16xf32>
    %27 = vector.multi_reduction <maximumf>, %26, %cst_10 [1] : vector<16x16xf32> to vector<16xf32>
    %28 = vector.shape_cast %27 : vector<16xf32> to vector<16x1xf32>
    %29 = vector.broadcast %28 : vector<16x1xf32> to vector<16x16xf32>
    %30 = arith.subf %26, %29 : vector<16x16xf32>
    %31 = math.exp %30 : vector<16x16xf32>
    %cst_11 = arith.constant 0.000000e+00 : f32
    %32 = vector.broadcast %cst_11 : f32 to vector<16x16xf32>
    %33 = arith.select %11, %31, %32 : vector<16x16xi1>, vector<16x16xf32>
    %cst_12 = arith.constant dense<0.000000e+00> : vector<16xf32>
    %34 = vector.multi_reduction <add>, %33, %cst_12 [1] : vector<16x16xf32> to vector<16xf32>
    %35 = vector.shape_cast %34 : vector<16xf32> to vector<16x1xf32>
    %36 = math.log %35 : vector<16x1xf32>
    %cst_13 = arith.constant 0.000000e+00 : f32
    %37 = vector.broadcast %cst_13 : f32 to vector<16x16xf32>
    %38 = arith.select %19, %30, %37 : vector<16x16xi1>, vector<16x16xf32>
    %cst_14 = arith.constant dense<0.000000e+00> : vector<16xf32>
    %39 = vector.multi_reduction <add>, %38, %cst_14 [1] : vector<16x16xf32> to vector<16xf32>
    %40 = vector.shape_cast %39 : vector<16xf32> to vector<16x1xf32>
    %41 = arith.mulf %40, %20 : vector<16x1xf32>
    %42 = arith.subf %41, %36 : vector<16x1xf32>
    %cst_15 = arith.constant -1.000000e+00 : f32
    %43 = vector.broadcast %cst_15 : f32 to vector<16x1xf32>
    %44 = arith.mulf %43, %42 : vector<16x1xf32>
    %cst_16 = arith.constant 0.000000e+00 : f32
    %45 = vector.broadcast %cst_16 : f32 to vector<16x1xf32>
    %46 = arith.select %13, %44, %45 : vector<16x1xi1>, vector<16x1xf32>
    %c0_17 = arith.constant 0 : index
    %c0_18 = arith.constant 0 : index
    %47 = vector.load %arg5[%c0_17, %c0_18] : memref<16x1xf32, #tpu.memory_space<vmem>>, vector<16x1xf32>
    tpu.vector_store %arg5[%c0_17, %c0_18], %46 {strides = array<i32>} : memref<16x1xf32, #tpu.memory_space<vmem>>, vector<16x1xf32>,
    return
  }
  func.func @transform_0(%arg0: i32) -> (i32, i32) {
    %c0_i32 = arith.constant 0 : i32
    %c0_i32_0 = arith.constant 0 : i32
    return %arg0, %c0_i32 : i32, i32
  }
  func.func @transform_1(%arg0: i32) -> (i32, i32) {
    %c0_i32 = arith.constant 0 : i32
    %c0_i32_0 = arith.constant 0 : i32
    return %arg0, %c0_i32 : i32, i32
  }
  func.func @transform_2(%arg0: i32) -> (i32, i32) {
    %c0_i32 = arith.constant 0 : i32
    %c0_i32_0 = arith.constant 0 : i32
    %c0_i32_1 = arith.constant 0 : i32
    return %c0_i32, %c0_i32_0 : i32, i32
  }
  func.func @transform_3(%arg0: i32) -> (i32, i32) {
    %c0_i32 = arith.constant 0 : i32
    %c0_i32_0 = arith.constant 0 : i32
    %c0_i32_1 = arith.constant 0 : i32
    return %c0_i32, %c0_i32_0 : i32, i32
  }
  func.func @transform_4(%arg0: i32) -> (i32, i32) {
    %c0_i32 = arith.constant 0 : i32
    %c0_i32_0 = arith.constant 0 : i32
    return %arg0, %c0_i32 : i32, i32
  }
}

module attributes {stable_mosaic.version = 11 : i64} {
  func.func @_supcon_label_kernel(%arg0: i32, %arg1: memref<16x1xi32, #tpu.memory_space<vmem>>, %arg2: memref<16x1xf32, #tpu.memory_space<vmem>>, %arg3: memref<1x16xi32, #tpu.memory_space<vmem>>, %arg4: memref<16x32xbf16, #tpu.memory_space<vmem>>, %arg5: memref<16x1xf32, #tpu.memory_space<vmem>>) attributes {dimension_semantics = [#tpu.dimension_semantics<parallel>], iteration_bounds = array<i64: 1>, scalar_prefetch = 0 : i64, scratch_operands = 0 : i64, tpu.core_type = #tpu.core_type<tc>, window_params = [{transform_indices = @transform_0, window_bounds = array<i64: 16, 1>}, {transform_indices = @transform_1, window_bounds = array<i64: 16, 1>}, {pipeline_mode = #tpu.pipeline_mode<synchronous>, transform_indices = @transform_2, window_bounds = array<i64: 1, 16>}, {pipeline_mode = #tpu.pipeline_mode<synchronous>, transform_indices = @transform_3, window_bounds = array<i64: 16, 32>}, {transform_indices = @transform_4, window_bounds = array<i64: 16, 1>}]} {
    %0 = tpu.iota {dimensions = array<i32: 0>} : vector<16x1xi32>
    %c16_i32 = arith.constant 16 : i32
    %1 = arith.muli %arg0, %c16_i32 : i32
    %2 = vector.broadcast %1 : i32 to vector<16x1xi32>
    %3 = arith.addi %0, %2 : vector<16x1xi32>
    %4 = tpu.iota {dimensions = array<i32: 1>} : vector<1x16xi32>
    %5 = vector.broadcast %4 : vector<1x16xi32> to vector<16x16xi32>
    %6 = vector.broadcast %3 : vector<16x1xi32> to vector<16x16xi32>
    %7 = arith.cmpi ne, %5, %6 : vector<16x16xi32>
    %c8_i32 = arith.constant 8 : i32
    %8 = vector.broadcast %c8_i32 : i32 to vector<1x16xi32>
    %9 = arith.cmpi slt, %4, %8 : vector<1x16xi32>
    %10 = vector.broadcast %9 : vector<1x16xi1> to vector<16x16xi1>
    %11 = arith.andi %7, %10 : vector<16x16xi1>
    %c8_i32_0 = arith.constant 8 : i32
    %12 = vector.broadcast %c8_i32_0 : i32 to vector<16x1xi32>
    %13 = arith.cmpi slt, %3, %12 : vector<16x1xi32>
    %c0 = arith.constant 0 : index
    %c0_1 = arith.constant 0 : index
    %14 = vector.load %arg1[%c0, %c0_1] : memref<16x1xi32, #tpu.memory_space<vmem>>, vector<16x1xi32>
    %c0_2 = arith.constant 0 : index
    %c0_3 = arith.constant 0 : index
    %15 = vector.load %arg3[%c0_2, %c0_3] : memref<1x16xi32, #tpu.memory_space<vmem>>, vector<1x16xi32>
    %16 = vector.broadcast %14 : vector<16x1xi32> to vector<16x16xi32>
    %17 = vector.broadcast %15 : vector<1x16xi32> to vector<16x16xi32>
    %18 = arith.cmpi eq, %16, %17 : vector<16x16xi32>
    %19 = arith.andi %18, %11 : vector<16x16xi1>
    %c0_4 = arith.constant 0 : index
    %c0_5 = arith.constant 0 : index
    %20 = vector.load %arg2[%c0_4, %c0_5] : memref<16x1xf32, #tpu.memory_space<vmem>>, vector<16x1xf32>
    %c16_i32_6 = arith.constant 16 : i32
    %21 = arith.muli %arg0, %c16_i32_6 : i32
    %22 = tpu.assume_multiple %21, 16 : i32
    %23 = arith.index_cast %22 : i32 to index
    %c0_7 = arith.constant 0 : index
    %24 = vector.load %arg4[%23, %c0_7] : memref<16x32xbf16, #tpu.memory_space<vmem>>, vector<16x32xbf16>
    %c0_8 = arith.constant 0 : index
    %c0_9 = arith.constant 0 : index
    %25 = vector.load %arg4[%c0_8, %c0_9] : memref<16x32xbf16, #tpu.memory_space<vmem>>, vector<16x32xbf16>
    %cst = arith.constant dense<0.000000e+00> : vector<16x16xf32>
    %26 = tpu.matmul %24, %25, %cst {dimension_numbers = #tpu.dot_dimension_numbers<[1], [1], [0], [0], [0, 0, 1, 0], [], []>} : vector<16x32xbf16>, vector<16x32xbf16>, vector<16x16xf32> -> vector<16x16xf32>
    %cst_10 = arith.constant dense<0xFF800000> : vector<16xf32>
    %27 = vector.multi_reduction <maximumf>, %26, %cst_10 [1] : vector<16x16xf32> to vector<16xf32>
    %28 = vector.shape_cast %27 : vector<16xf32> to vector<16x1xf32>
    %29 = vector.broadcast %28 : vector<16x1xf32> to vector<16x16xf32>
    %30 = arith.subf %26, %29 : vector<16x16xf32>
    %31 = math.exp %30 : vector<16x16xf32>
    %cst_11 = arith.constant 0.000000e+00 : f32
    %32 = vector.broadcast %cst_11 : f32 to vector<16x16xf32>
    %33 = arith.select %11, %31, %32 : vector<16x16xi1>, vector<16x16xf32>
    %cst_12 = arith.constant dense<0.000000e+00> : vector<16xf32>
    %34 = vector.multi_reduction <add>, %33, %cst_12 [1] : vector<16x16xf32> to vector<16xf32>
    %35 = vector.shape_cast %34 : vector<16xf32> to vector<16x1xf32>
    %36 = math.log %35 : vector<16x1xf32>
    %cst_13 = arith.constant 0.000000e+00 : f32
    %37 = vector.broadcast %cst_13 : f32 to vector<16x16xf32>
    %38 = arith.select %19, %30, %37 : vector<16x16xi1>, vector<16x16xf32>
    %cst_14 = arith.constant dense<0.000000e+00> : vector<16xf32>
    %39 = vector.multi_reduction <add>, %38, %cst_14 [1] : vector<16x16xf32> to vector<16xf32>
    %40 = vector.shape_cast %39 : vector<16xf32> to vector<16x1xf32>
    %41 = arith.mulf %40, %20 : vector<16x1xf32>
    %42 = arith.subf %41, %36 : vector<16x1xf32>
    %cst_15 = arith.constant -1.000000e+00 : f32
    %43 = vector.broadcast %cst_15 : f32 to vector<16x1xf32>
    %44 = arith.mulf %43, %42 : vector<16x1xf32>
    %cst_16 = arith.constant 0.000000e+00 : f32
    %45 = vector.broadcast %cst_16 : f32 to vector<16x1xf32>
    %46 = arith.select %13, %44, %45 : vector<16x1xi1>, vector<16x1xf32>
    %c0_17 = arith.constant 0 : index
    %c0_18 = arith.constant 0 : index
    %47 = vector.load %arg5[%c0_17, %c0_18] : memref<16x1xf32, #tpu.memory_space<vmem>>, vector<16x1xf32>
    tpu.vector_store %arg5[%c0_17, %c0_18], %46 {strides = array<i32>} : memref<16x1xf32, #tpu.memory_space<vmem>>, vector<16x1xf32>,
    return
  }
  func.func @transform_0(%arg0: i32) -> (i32, i32) {
    %c0_i32 = arith.constant 0 : i32
    %c0_i32_0 = arith.constant 0 : i32
    return %arg0, %c0_i32 : i32, i32
  }
  func.func @transform_1(%arg0: i32) -> (i32, i32) {
    %c0_i32 = arith.constant 0 : i32
    %c0_i32_0 = arith.constant 0 : i32
    return %arg0, %c0_i32 : i32, i32
  }
  func.func @transform_2(%arg0: i32) -> (i32, i32) {
    %c0_i32 = arith.constant 0 : i32
    %c0_i32_0 = arith.constant 0 : i32
    %c0_i32_1 = arith.constant 0 : i32
    return %c0_i32, %c0_i32_0 : i32, i32
  }
  func.func @transform_3(%arg0: i32) -> (i32, i32) {
    %c0_i32 = arith.constant 0 : i32
    %c0_i32_0 = arith.constant 0 : i32
    %c0_i32_1 = arith.constant 0 : i32
    return %c0_i32, %c0_i32_0 : i32, i32
  }
  func.func @transform_4(%arg0: i32) -> (i32, i32) {
    %c0_i32 = arith.constant 0 : i32
    %c0_i32_0 = arith.constant 0 : i32
    return %arg0, %c0_i32 : i32, i32
  }
}

</mosaic_0001>

<llo_original>
// kernel: tpu_custom_call.1
$region0: #{tpu_custom_call.1}
  #allocation0 [shape = 'u32[]', space=smem, size = 0x4, offset = 0x4, fixed_abs, tag = 'smem constant byte address 0x4 - core index']
  #allocation1 [shape = 'u32[72,128]{1,0:T(1,128)}', space=vmem, size = 0x9000, scoped, tag = 'internal scratch']
  %s0 = inlined_call_operand.vmem [shape: s32[16,1], index: 0, kind: input, shape index: {}]
  %s1 = inlined_call_operand.vmem [shape: f32[16,1], index: 1, kind: input, shape index: {}]
  %s2 = inlined_call_operand.vmem [shape: s32[1,16], index: 2, kind: input, shape index: {}]
  %s3 = inlined_call_operand.vmem [shape: bf16[16,32], index: 3, kind: input, shape index: {}]
  %s4 = inlined_call_operand.vmem [shape: f32[16,1], index: 4, kind: output, shape index: {}]
  %s5 = sld [smem:[#allocation0]]
  $region26: #{tpu_custom_call.1} parent=0
    _
  %s7 = ssub.s32 1, %s5
  %s8 = scalar_select 0, %s7, %s5
  // Predicated region
  $region2: #{tpu_custom_call.1} parent=0 // pred_check
    _
  $region3: #{tpu_custom_call.1} parent=0 // pred_check_branch
    %10 = sbr.rel (0) target = $region5
  $region4: #{tpu_custom_call.1} parent=0 // pred_region
    _
  $region5: #{tpu_custom_call.1} parent=0 // pred_fallthru
    _
  // Predicated region
  $region6: #{tpu_custom_call.1} parent=0 // pred_check
    _
  $region7: #{tpu_custom_call.1} parent=0 // pred_check_branch
    %12 = sbr.rel (0) target = $region9
  $region8: #{tpu_custom_call.1} parent=0 // pred_region
    _
  $region9: #{tpu_custom_call.1} parent=0 // pred_fallthru
    _
  // Predicated region
  $region10: #{tpu_custom_call.1} parent=0 // pred_check
    _
  $region11: #{tpu_custom_call.1} parent=0 // pred_check_branch
    %14 = sbr.rel (0) target = $region13
  $region12: #{tpu_custom_call.1} parent=0 // pred_region
    _
  $region13: #{tpu_custom_call.1} parent=0 // pred_fallthru
    _
  // Predicated region
  $region14: #{tpu_custom_call.1} parent=0 // pred_check
    _
  $region15: #{tpu_custom_call.1} parent=0 // pred_check_branch
    %16 = sbr.rel (0) target = $region17
  $region16: #{tpu_custom_call.1} parent=0 // pred_region
    _
  $region17: #{tpu_custom_call.1} parent=0 // pred_fallthru
    _
  %v18 = vlaneseq
  %v19 = vshrl.u32 %v18, 7
  %v20 = vadd.s32 %v19, 8
  %s21 = smul.u32 0, 16
  %v22 = vstv %s21
  %v23 = vadd.s32 %v19, %v22
  %v24 = vadd.s32 %v20, %v22
  %v25 = vlaneseq
  %v26 = vand.u32 %v25, 127
  %vm27 = vcmp.ne.s32.totalorder %v26, %v23
  %vm28 = vcmp.ne.s32.totalorder %v26, %v24
  %vm29 = vcmp.lt.s32.totalorder %v26, 8
  %v30 = vsel %vm29, 1, 0
  %vm31 = vcmp.eq.s32.totalorder %v30, 1
  %vm32 = vmand %vm27, %vm31
  %vm33 = vmand %vm28, %vm31
  %vm34 = vcmp.lt.s32.totalorder %v23, 8
  %vm35 = vcmp.lt.s32.totalorder %v24, 8
  %v36 = vld [vmem:[%s0] sm:$0xff]
  %v37 = vld [vmem:[%s0 + $0x8] sm:$0xff]
  %v38 = vld [vmem:[%s2] sm:$0x1]
  %39 = vset.pattern.permute.xlu0 0
  %40 = vperm.xlu0 %39, %v36
  %v41 = vpop.permute.xlu0 %40
  %42 = vset.pattern.permute.xlu0 0
  %43 = vperm.xlu0 %42, %v37
  %v44 = vpop.permute.xlu0 %43
  %v45 = vperm.slane %v38, 0
  %vm46 = vcmp.eq.s32.totalorder %v41, %v45
  %vm47 = vcmp.eq.s32.totalorder %v44, %v45
  %vm48 = vmand %vm46, %vm32
  %vm49 = vmand %vm47, %vm33
  %v50 = vld [vmem:[%s1] sm:$0xff]
  %v51 = vld [vmem:[%s1 + $0x8] sm:$0xff]
  %s52 = sshra.s32 %s21, 3
  %s53 = sand.u32 %s21, 7
  %s54 = smul.addr %s52, 4
  %s55 = scalar_lea.vmem %s3, %s54
  %v56 = vld [vmem:[%s55] sm:$0xf]
  %v57 = vld [vmem:[%s55 + $0x4] sm:$0xf]
  %v58 = vld [vmem:[%s3] sm:$0xf]
  %v59 = vld [vmem:[%s3 + $0x4] sm:$0xf]
  %v62 = vunpack.c.l.b16 %v56
  %v63 = vunpack.c.l.b16 %v57
  %v64 = vpack.c.b16 %v63, %v62
  %v67 = vunpack.c.l.b16 %v58
  %v68 = vunpack.c.l.b16 %v59
  %v69 = vpack.c.b16 %v68, %v67
  %vm70 = vcmask 261120
  %v72 = vsel %vm70, %v64, 0
  %v75 = vsel %vm70, %v69, 0
  %77 = vmatpush.bf16.xpose.msra.mxu0 0
  %78 = vmatpush.bf16.xpose.msra.mxu0 0
  %79 = vmatpush.bf16.xpose.msra.mxu0 0
  %80 = vmatpush.bf16.xpose.msra.mxu0 0
  %81 = vmatpush.bf16.xpose.msra.mxu0 0
  %82 = vmatpush.bf16.xpose.msra.mxu0 0
  %83 = vmatpush.bf16.xpose.msra.mxu0 0
  %84 = vmatpush.bf16.xpose.msra.mxu0 %v75
  %85 = vmatmul.bf16.gmra.mxu0 %v72
  %v86 = vpop.f32.mrf.mxu0
  %v87 = vadd.f32 0.0, %v86
  %v88 = vpop.f32.mrf.mxu0
  %v89 = vadd.f32 0.0, %v88
  %90 = vdwg.mxu0
  %vm91 = vcmask 130048
  %v92 = vsel %vm91, %v87, -inf
  %93 = vmax.xlane.f32.xlu0 %v92
  %v94 = vpop.xlane.xlu0 %93
  %v95 = vsel %vm91, %v89, -inf
  %96 = vmax.xlane.f32.xlu0 %v95
  %v97 = vpop.xlane.xlu0 %96
  %v98 = vsub.f32 %v87, %v94
  %v99 = vsub.f32 %v89, %v97
  %v100 = vmul.f32 %v98, 1.442695
  %v101 = vpow.pop %v100
  %v102 = vmul.f32 %v99, 1.442695
  %v103 = vpow.pop %v102
  %v104 = vsel %vm32, %v101, 0.0
  %v105 = vsel %vm33, %v103, 0.0
  %v106 = vsel %vm91, %v104, 0.0
  %107 = vadd.xlane.f32.xlu0 %v106
  %v108 = vpop.xlane.xlu0 %107
  %v109 = vsel %vm91, %v105, 0.0
  %110 = vadd.xlane.f32.xlu0 %v109
  %v111 = vpop.xlane.xlu0 %110
  %v112 = vlog2.pop %v108
  %v113 = vmul.f32 %v112, 0.6931472
  %v114 = vlog2.pop %v111
  %v115 = vmul.f32 %v114, 0.6931472
  %v116 = vsel %vm48, %v98, 0.0
  %v117 = vsel %vm49, %v99, 0.0
  %v118 = vsel %vm91, %v116, 0.0
  %119 = vadd.xlane.f32.xlu0 %v118
  %v120 = vpop.xlane.xlu0 %119
  %v121 = vsel %vm91, %v117, 0.0
  %122 = vadd.xlane.f32.xlu0 %v121
  %v123 = vpop.xlane.xlu0 %122
  %v124 = vmul.f32 %v120, %v50
  %v125 = vmul.f32 %v123, %v51
  %v126 = vsub.f32 %v124, %v113
  %v127 = vsub.f32 %v125, %v115
  %v128 = vmul.f32 %v126, -1.0
  %v129 = vmul.f32 %v127, -1.0
  %v130 = vsel %vm34, %v128, 0.0
  %v131 = vsel %vm35, %v129, 0.0
  %vm132 = vcmask 7168
  %133 = vst.msk [vmem:[%s4] sm:$0xff] %vm132, %v130
  %134 = vst.msk [vmem:[%s4 + $0x8] sm:$0xff] %vm132, %v131
  // Predicated region
  $region18: #{tpu_custom_call.1} parent=0 // pred_check
    _
  $region19: #{tpu_custom_call.1} parent=0 // pred_check_branch
    %136 = sbr.rel (0) target = $region21
  $region20: #{tpu_custom_call.1} parent=0 // pred_region
    _
  $region21: #{tpu_custom_call.1} parent=0 // pred_fallthru
    _
  // Predicated region
  $region22: #{tpu_custom_call.1} parent=0 // pred_check
    _
  $region23: #{tpu_custom_call.1} parent=0 // pred_check_branch
    %138 = sbr.rel (0) target = $region25
  $region24: #{tpu_custom_call.1} parent=0 // pred_region
    _
  $region25: #{tpu_custom_call.1} parent=0 // pred_fallthru
    _

// kernel: tpu_custom_call.1
$region0: #{tpu_custom_call.1}
  #allocation0 [shape = 'u32[]', space=smem, size = 0x4, offset = 0x4, fixed_abs, tag = 'smem constant byte address 0x4 - core index']
  #allocation1 [shape = 'u32[72,128]{1,0:T(1,128)}', space=vmem, size = 0x9000, scoped, tag = 'internal scratch']
  %s0 = inlined_call_operand.vmem [shape: s32[16,1], index: 0, kind: input, shape index: {}]
  %s1 = inlined_call_operand.vmem [shape: f32[16,1], index: 1, kind: input, shape index: {}]
  %s2 = inlined_call_operand.vmem [shape: s32[1,16], index: 2, kind: input, shape index: {}]
  %s3 = inlined_call_operand.vmem [shape: bf16[16,32], index: 3, kind: input, shape index: {}]
  %s4 = inlined_call_operand.vmem [shape: f32[16,1], index: 4, kind: output, shape index: {}]
  %s5 = sld [smem:[#allocation0]]
  $region26: #{tpu_custom_call.1} parent=0
    _
  %s7 = ssub.s32 1, %s5
  %s8 = scalar_select 0, %s7, %s5
  // Predicated region
  $region2: #{tpu_custom_call.1} parent=0 // pred_check
    _
  $region3: #{tpu_custom_call.1} parent=0 // pred_check_branch
    %10 = sbr.rel (0) target = $region5
  $region4: #{tpu_custom_call.1} parent=0 // pred_region
    _
  $region5: #{tpu_custom_call.1} parent=0 // pred_fallthru
    _
  // Predicated region
  $region6: #{tpu_custom_call.1} parent=0 // pred_check
    _
  $region7: #{tpu_custom_call.1} parent=0 // pred_check_branch
    %12 = sbr.rel (0) target = $region9
  $region8: #{tpu_custom_call.1} parent=0 // pred_region
    _
  $region9: #{tpu_custom_call.1} parent=0 // pred_fallthru
    _
  // Predicated region
  $region10: #{tpu_custom_call.1} parent=0 // pred_check
    _
  $region11: #{tpu_custom_call.1} parent=0 // pred_check_branch
    %14 = sbr.rel (0) target = $region13
  $region12: #{tpu_custom_call.1} parent=0 // pred_region
    _
  $region13: #{tpu_custom_call.1} parent=0 // pred_fallthru
    _
  // Predicated region
  $region14: #{tpu_custom_call.1} parent=0 // pred_check
    _
  $region15: #{tpu_custom_call.1} parent=0 // pred_check_branch
    %16 = sbr.rel (0) target = $region17
  $region16: #{tpu_custom_call.1} parent=0 // pred_region
    _
  $region17: #{tpu_custom_call.1} parent=0 // pred_fallthru
    _
  %v18 = vlaneseq
  %v19 = vshrl.u32 %v18, 7
  %v20 = vadd.s32 %v19, 8
  %s21 = smul.u32 0, 16
  %v22 = vstv %s21
  %v23 = vadd.s32 %v19, %v22
  %v24 = vadd.s32 %v20, %v22
  %v25 = vlaneseq
  %v26 = vand.u32 %v25, 127
  %vm27 = vcmp.ne.s32.totalorder %v26, %v23
  %vm28 = vcmp.ne.s32.totalorder %v26, %v24
  %vm29 = vcmp.lt.s32.totalorder %v26, 8
  %v30 = vsel %vm29, 1, 0
  %vm31 = vcmp.eq.s32.totalorder %v30, 1
  %vm32 = vmand %vm27, %vm31
  %vm33 = vmand %vm28, %vm31
  %vm34 = vcmp.lt.s32.totalorder %v23, 8
  %vm35 = vcmp.lt.s32.totalorder %v24, 8
  %v36 = vld [vmem:[%s0] sm:$0xff]
  %v37 = vld [vmem:[%s0 + $0x8] sm:$0xff]
  %v38 = vld [vmem:[%s2] sm:$0x1]
  %39 = vset.pattern.permute.xlu0 0
  %40 = vperm.xlu0 %39, %v36
  %v41 = vpop.permute.xlu0 %40
  %42 = vset.pattern.permute.xlu0 0
  %43 = vperm.xlu0 %42, %v37
  %v44 = vpop.permute.xlu0 %43
  %v45 = vperm.slane %v38, 0
  %vm46 = vcmp.eq.s32.totalorder %v41, %v45
  %vm47 = vcmp.eq.s32.totalorder %v44, %v45
  %vm48 = vmand %vm46, %vm32
  %vm49 = vmand %vm47, %vm33
  %v50 = vld [vmem:[%s1] sm:$0xff]
  %v51 = vld [vmem:[%s1 + $0x8] sm:$0xff]
  %s52 = sshra.s32 %s21, 3
  %s53 = sand.u32 %s21, 7
  %s54 = smul.addr %s52, 4
  %s55 = scalar_lea.vmem %s3, %s54
  %v56 = vld [vmem:[%s55] sm:$0xf]
  %v57 = vld [vmem:[%s55 + $0x4] sm:$0xf]
  %v58 = vld [vmem:[%s3] sm:$0xf]
  %v59 = vld [vmem:[%s3 + $0x4] sm:$0xf]
  %v62 = vunpack.c.l.b16 %v56
  %v63 = vunpack.c.l.b16 %v57
  %v64 = vpack.c.b16 %v63, %v62
  %v67 = vunpack.c.l.b16 %v58
  %v68 = vunpack.c.l.b16 %v59
  %v69 = vpack.c.b16 %v68, %v67
  %vm70 = vcmask 261120
  %v72 = vsel %vm70, %v64, 0
  %v75 = vsel %vm70, %v69, 0
  %77 = vmatpush.bf16.xpose.msra.mxu0 0
  %78 = vmatpush.bf16.xpose.msra.mxu0 0
  %79 = vmatpush.bf16.xpose.msra.mxu0 0
  %80 = vmatpush.bf16.xpose.msra.mxu0 0
  %81 = vmatpush.bf16.xpose.msra.mxu0 0
  %82 = vmatpush.bf16.xpose.msra.mxu0 0
  %83 = vmatpush.bf16.xpose.msra.mxu0 0
  %84 = vmatpush.bf16.xpose.msra.mxu0 %v75
  %85 = vmatmul.bf16.gmra.mxu0 %v72
  %v86 = vpop.f32.mrf.mxu0
  %v87 = vadd.f32 0.0, %v86
  %v88 = vpop.f32.mrf.mxu0
  %v89 = vadd.f32 0.0, %v88
  %90 = vdwg.mxu0
  %vm91 = vcmask 130048
  %v92 = vsel %vm91, %v87, -inf
  %93 = vmax.xlane.f32.xlu0 %v92
  %v94 = vpop.xlane.xlu0 %93
  %v95 = vsel %vm91, %v89, -inf
  %96 = vmax.xlane.f32.xlu0 %v95
  %v97 = vpop.xlane.xlu0 %96
  %v98 = vsub.f32 %v87, %v94
  %v99 = vsub.f32 %v89, %v97
  %v100 = vmul.f32 %v98, 1.442695
  %v101 = vpow.pop %v100
  %v102 = vmul.f32 %v99, 1.442695
  %v103 = vpow.pop %v102
  %v104 = vsel %vm32, %v101, 0.0
  %v105 = vsel %vm33, %v103, 0.0
  %v106 = vsel %vm91, %v104, 0.0
  %107 = vadd.xlane.f32.xlu0 %v106
  %v108 = vpop.xlane.xlu0 %107
  %v109 = vsel %vm91, %v105, 0.0
  %110 = vadd.xlane.f32.xlu0 %v109
  %v111 = vpop.xlane.xlu0 %110
  %v112 = vlog2.pop %v108
  %v113 = vmul.f32 %v112, 0.6931472
  %v114 = vlog2.pop %v111
  %v115 = vmul.f32 %v114, 0.6931472
  %v116 = vsel %vm48, %v98, 0.0
  %v117 = vsel %vm49, %v99, 0.0
  %v118 = vsel %vm91, %v116, 0.0
  %119 = vadd.xlane.f32.xlu0 %v118
  %v120 = vpop.xlane.xlu0 %119
  %v121 = vsel %vm91, %v117, 0.0
  %122 = vadd.xlane.f32.xlu0 %v121
  %v123 = vpop.xlane.xlu0 %122
  %v124 = vmul.f32 %v120, %v50
  %v125 = vmul.f32 %v123, %v51
  %v126 = vsub.f32 %v124, %v113
  %v127 = vsub.f32 %v125, %v115
  %v128 = vmul.f32 %v126, -1.0
  %v129 = vmul.f32 %v127, -1.0
  %v130 = vsel %vm34, %v128, 0.0
  %v131 = vsel %vm35, %v129, 0.0
  %vm132 = vcmask 7168
  %133 = vst.msk [vmem:[%s4] sm:$0xff] %vm132, %v130
  %134 = vst.msk [vmem:[%s4 + $0x8] sm:$0xff] %vm132, %v131
  // Predicated region
  $region18: #{tpu_custom_call.1} parent=0 // pred_check
    _
  $region19: #{tpu_custom_call.1} parent=0 // pred_check_branch
    %136 = sbr.rel (0) target = $region21
  $region20: #{tpu_custom_call.1} parent=0 // pred_region
    _
  $region21: #{tpu_custom_call.1} parent=0 // pred_fallthru
    _
  // Predicated region
  $region22: #{tpu_custom_call.1} parent=0 // pred_check
    _
  $region23: #{tpu_custom_call.1} parent=0 // pred_check_branch
    %138 = sbr.rel (0) target = $region25
  $region24: #{tpu_custom_call.1} parent=0 // pred_region
    _
  $region25: #{tpu_custom_call.1} parent=0 // pred_fallthru
    _

</llo_original>
